<compile_context>
chip_gen: v7x
topology: tpu7x:2x2x1
jax: 0.10.0
libtpu: 0.0.40
codegen_flags: <defaults>
</compile_context>

<pallas_src>
import functools

import jax
import jax.numpy as jnp
import numpy as np
from jax.experimental import pallas as pl
from jax.experimental.pallas import tpu as pltpu

DIM_STOCHASTIC = 16
DIM_TREAT = 10            # >= 8 so the control_layer prior-init slice [-8:-3] is valid
DIM_INPUT = DIM_STOCHASTIC
DIM_OUTPUT = DIM_STOCHASTIC
ONES_ROW = DIM_INPUT + DIM_TREAT      # row of the packed operand that carries 1.0 (bias fold)
K_PAD = 32                            # packed feature rows (bf16 sublane-tile multiple)


def te_matrix():
    return np.array(
        [[-1, 0, 1, -1, 1, 0, -1, -1, -1, -1, -1, -1, -1, -1, -1, -1],
         [-1, 0, 1, -1, 1, 1, -1, -1, -1, -1, -1, -1, -1, -1, -1, -1],
         [-1, 0, 1, -1, 1, 0, -1, -1, -1, -1, -1, -1, -1, -1, -1, -1],
         [-1, 0, 0, -1, 0, 1, 1, 0, 0, 1, 0, -1, 0, 0, 0, 0],
         [-1, 0, 1, -1, 1, -1, -1, -1, -1, -1, -1, -1, -1, -1, -1, -1]],
        dtype=np.float32)


def gated_transition_kernel(a_ref, wbig_ref, wtail_ref, misc_ref, o_ref, *, lin_is_eye):
    """Lane-dense tile: features on sublanes, rows (batch*time) on lanes.

    a_ref:    (32, TN)       bf16  [inpx^T ; con^T ; ones ; 0] tile
    wbig_ref: (80, 32)       bf16  block weight [wi^T | 0 | bi ; 0 | wc^T | bc ; ...
                                    ; 0 | wl1^T | bl1 ; 0 | wt1^T | bt1 ; 0 | -wt2^T | -bt2]
    wtail_ref:(16,16)/(32,16) f32  wo^T (eye path)  /  [(lin@wo)^T ; wo^T] (general path)
    misc_ref: (16, 4)        f32   columns: p_lin, p_logcell, p_te, bo
    o_ref:    (16, TN)       bf16  output^T tile
    """
    f32 = jnp.float32
    ds = DIM_STOCHASTIC
    do = DIM_OUTPUT

    # Single fused, bias-folded projection for all five linear layers:
    # (80,32)bf16 @ (32,TN)bf16 -> (80,TN)f32 on the MXU (no VPU upcasts, no bias adds).
    p = jnp.dot(wbig_ref[...], a_ref[...], preferred_element_type=f32)

    inp = p[0 * ds:1 * ds, :]                       # inp_layer(inpx)^T
    gate = jnp.tanh(p[1 * ds:2 * ds, :])            # tanh(control_layer(con))^T
    a1_lck = jax.nn.sigmoid(p[2 * ds:3 * ds, :])    # logcell alpha_1
    a1_te = jax.nn.sigmoid(p[3 * ds:4 * ds, :])     # treatment-exp alpha_1
    att = jax.nn.sigmoid(p[4 * ds:5 * ds, :])       # exp(-softplus(z)) == sigmoid(-z); sign folded into weights

    m = misc_ref[...]
    p_lin, p_lck, p_te, bo = m[:, 0:1], m[:, 1:2], m[:, 2:3], m[:, 3:4]

    # TODO(synk): LogCellKill / TreatmentExponential sources were not provided with the
    # module; reconstructed response_only forms:
    #   logcell:       inp * (1 - sigmoid(W c + b) * log(|inp| + 1e-3))
    #   treatment_exp: sigmoid(W1 c + b1) * inp * exp(-softplus(W2 c + b2)), eps = 0
    logterm = jnp.log(jnp.abs(inp) + 1e-3)
    # out = p0*out_linear + p1*out_logcell + p2*out_te, factored as inp * g.
    g = p_lin * gate + p_lck * (1.0 - a1_lck * logterm) + p_te * (a1_te * att)
    out = inp * g

    wt = wtail_ref[...]
    if lin_is_eye:
        # linear_layer == eye: out_layer(inp + out) with one (16,16) matmul.
        y = jnp.dot(wt, inp + out, preferred_element_type=f32) + bo
    else:
        # General case: out_layer(inp @ linear_layer + out), lin folded into (lin@wo).
        y = (jnp.dot(wt[0:do, :], inp, preferred_element_type=f32)
             + jnp.dot(wt[do:2 * do, :], out, preferred_element_type=f32) + bo)
    o_ref[...] = y.astype(o_ref.dtype)


def _choose_lane_tile(n_rows):
    """Pick the lane (last-dim) tile size.

    Targets ~1.5 MB of HBM per grid step (96 B per lane column at bf16 in/out) so the
    ~0.35us per-step pipeline overhead is amortized, prefers an even number (>=2) of
    grid steps (v7x's two TensorCores split the 'parallel' axis), and caps at 16384
    columns so worst-case VMEM stays well under every generation's limit.
    """
    candidates = (16384, 8192, 4096, 2048, 1024, 512, 256, 128)
    viable = [c for c in candidates if (n_rows + c - 1) // c >= 2]
    if not viable:
        return 128                         # tiny problem: single grid step
    for c in viable:                       # largest tile with an even step count
        if ((n_rows + c - 1) // c) % 2 == 0:
            return c
    return viable[0]                       # no even split available: just go big


@functools.partial(jax.jit, static_argnames=("lin_is_eye", "out_dtype"))
def _gated_transition_impl(inpx, con, params, lin_is_eye=True, out_dtype=jnp.bfloat16):
    ds, dt, do = DIM_STOCHASTIC, DIM_TREAT, DIM_OUTPUT
    lead = inpx.shape[:-1]
    n = int(np.prod(lead)) if lead else 1
    tn = _choose_lane_tile(n)
    n_pad = ((n + tn - 1) // tn) * tn

    # ---- Layout plumbing (one cast + one transpose pass; XLA fuses concat/pad). ----
    # Rows -> lane axis, features -> sublane axis, bf16 streaming, single operand.
    x2 = inpx.reshape(n, DIM_INPUT).astype(jnp.bfloat16)
    c2 = con.reshape(n, dt).astype(jnp.bfloat16)
    ones = jnp.ones((n, 1), jnp.bfloat16)                       # bias-fold row
    zpad = jnp.zeros((n, K_PAD - ONES_ROW - 1), jnp.bfloat16)
    a = jnp.concatenate([x2, c2, ones, zpad], axis=1).T         # (32, n) bf16
    if n_pad != n:
        a = jnp.pad(a, ((0, 0), (0, n_pad - n)))                # padded cols: ones-row=0 -> harmless

    # ---- Parameter packing (once, outside the grid loop). ----
    # Block weight: rows [inp ; control ; logcell a1 ; te a1 ; te a2(negated)],
    # cols [x-features | c-features | bias column | zero pad].
    wbig = jnp.zeros((5 * ds, K_PAD), jnp.float32)
    wbig = wbig.at[0 * ds:1 * ds, 0:DIM_INPUT].set(params["wi"].T)
    wbig = wbig.at[1 * ds:2 * ds, DIM_INPUT:ONES_ROW].set(params["wc"].T)
    wbig = wbig.at[2 * ds:3 * ds, DIM_INPUT:ONES_ROW].set(params["wl1"].T)
    wbig = wbig.at[3 * ds:4 * ds, DIM_INPUT:ONES_ROW].set(params["wt1"].T)
    wbig = wbig.at[4 * ds:5 * ds, DIM_INPUT:ONES_ROW].set(-params["wt2"].T)
    bias_col = jnp.concatenate([params["bi"], params["bc"], params["bl1"],
                                params["bt1"], -params["bt2"]], axis=1).reshape(5 * ds)
    wbig = wbig.at[:, ONES_ROW].set(bias_col)
    wbig = wbig.astype(jnp.bfloat16)                            # bf16 x bf16 -> f32 MXU

    if lin_is_eye:
        wtail = params["wo"].T.astype(jnp.float32)              # (do, ds)
    else:
        wtail = jnp.concatenate([(params["lin"] @ params["wo"]).T,
                                 params["wo"].T], axis=0).astype(jnp.float32)  # (2*do, ds)

    # misc: mixture probabilities + output bias (ds == do in this config).
    probs = jax.nn.softmax(params["alphas"], axis=1)            # (ds, 3)
    misc = jnp.concatenate([probs, params["bo"].T], axis=1).astype(jnp.float32)  # (16, 4)

    kernel = functools.partial(gated_transition_kernel, lin_is_eye=lin_is_eye)
    full = lambda arr: pl.BlockSpec(arr.shape, lambda i: (0, 0))

    outT = pl.pallas_call(
        kernel,
        out_shape=jax.ShapeDtypeStruct((do, n_pad), out_dtype),
        grid=(n_pad // tn,),
        in_specs=[pl.BlockSpec((K_PAD, tn), lambda i: (0, i)),
                  full(wbig), full(wtail), full(misc)],
        out_specs=pl.BlockSpec((do, tn), lambda i: (0, i)),
        compiler_params=pltpu.CompilerParams(
            dimension_semantics=("parallel",),
            vmem_limit_bytes=48 * 1024 * 1024),
    )(a, wbig, wtail, misc)

    return outT[:, :n].T.reshape(lead + (do,))


def gated_transition(inpx, con, params, out_dtype=jnp.bfloat16):
    """Public entry point. Detects the default linear_layer == eye case (concrete
    params) outside jit so the kernel can use the single-matmul tail specialization."""
    lin = np.asarray(params["lin"])
    lin_is_eye = bool(lin.ndim == 2 and lin.shape[0] == lin.shape[1]
                      and np.allclose(lin, np.eye(lin.shape[0], dtype=lin.dtype)))
    return _gated_transition_impl(inpx, con, params,
                                  lin_is_eye=lin_is_eye, out_dtype=out_dtype)


def init_params(key):
    ds, dt, din, dout = DIM_STOCHASTIC, DIM_TREAT, DIM_INPUT, DIM_OUTPUT
    keys = jax.random.split(key, 8)

    def linear(k, fan_in, fan_out):
        # PyTorch nn.Linear default init: U(-1/sqrt(fan_in), 1/sqrt(fan_in)).
        kw, kb = jax.random.split(k)
        bound = 1.0 / np.sqrt(fan_in)
        w = jax.random.uniform(kw, (fan_in, fan_out), jnp.float32, -bound, bound)
        b = jax.random.uniform(kb, (1, fan_out), jnp.float32, -bound, bound)
        return w, b

    wi, bi = linear(keys[0], din, ds)       # inp_layer
    wc, bc = linear(keys[1], dt, ds)        # control_layer
    # control_layer prior init (use_te=False branch):
    #   weight[:, -8:-3] = (te_matrix @ (randn(16, ds) * 0.1)).T
    te = jnp.asarray(te_matrix())                           # (5, 16)
    rand_w = jax.random.normal(keys[2], (16, ds), jnp.float32) * 0.1
    pw = te @ rand_w                                        # (5, ds)
    # wc is stored transposed (dt, ds), so torch's weight[:, -8:-3] == wc[dt-8:dt-3, :]
    wc = wc.at[dt - 8:dt - 3, :].set(pw)

    wl1, bl1 = linear(keys[3], dt, ds)      # logcell alpha_1
    wt1, bt1 = linear(keys[4], dt, ds)      # treatment_exp alpha_1
    wt2, bt2 = linear(keys[5], dt, ds)      # treatment_exp alpha_2
    wo, bo = linear(keys[6], ds, dout)      # out_layer

    return dict(wi=wi, bi=bi, wc=wc, bc=bc, wl1=wl1, bl1=bl1,
                wt1=wt1, bt1=bt1, wt2=wt2, bt2=bt2, wo=wo, bo=bo,
                lin=jnp.eye(ds, dtype=jnp.float32),          # linear_layer = eye(Ds)
                alphas=jnp.ones((ds, 3), jnp.float32))       # reset_parameters: constant 1


def reference(inpx, con, params):
    # Pure-JAX mirror of the PyTorch forward.  Inputs and the five fused projection
    # weights/biases are quantized to bf16 exactly as the kernel path (compute in f32),
    # so only MXU accumulation order and the bf16 output store differ.  Users comparing
    # against the true f32 torch forward will see bf16-level deviations.
    p = params
    q = lambda a: a.astype(jnp.bfloat16).astype(jnp.float32)
    x = q(inpx.reshape(-1, inpx.shape[-1]))
    c = q(con.reshape(-1, con.shape[-1]))
    inp = x @ q(p["wi"]) + q(p["bi"])
    out_linear = inp * jnp.tanh(c @ q(p["wc"]) + q(p["bc"]))
    a1 = jax.nn.sigmoid(c @ q(p["wl1"]) + q(p["bl1"]))
    out_logcell = inp * (1.0 - a1 * jnp.log(jnp.abs(inp) + 1e-3))
    a1t = jax.nn.sigmoid(c @ q(p["wt1"]) + q(p["bt1"]))
    a2t = jax.nn.softplus(c @ q(p["wt2"]) + q(p["bt2"]))
    out_te = a1t * inp * jnp.exp(-a2t)
    probs = jax.nn.softmax(p["alphas"], axis=1)  # (Ds, 3)
    out = (probs[None, :, 0] * out_linear + probs[None, :, 1] * out_logcell
           + probs[None, :, 2] * out_te)
    y = (inp @ p["lin"] + out) @ p["wo"] + p["bo"]
    return y.reshape(inpx.shape[:-1] + (DIM_OUTPUT,))


if __name__ == "__main__":
    key = jax.random.PRNGKey(0)
    kp, kx, kc = jax.random.split(key, 3)
    params = init_params(kp)

    # batch=2, seq=8 -> 16 rows; inpx: (2, 8, 16), con: (2, 8, 10)
    inpx = jax.random.normal(kx, (2, 8, DIM_INPUT), jnp.float32)
    con = jax.random.normal(kc, (2, 8, DIM_TREAT), jnp.float32)

    out = gated_transition(inpx, con, params)
    jax.block_until_ready(out)

    ref = reference(inpx, con, params)
    assert out.shape == ref.shape == (2, 8, DIM_OUTPUT)
    np.testing.assert_allclose(np.asarray(out.astype(jnp.float32)), np.asarray(ref),
                               rtol=1e-2, atol=1e-2)

    print("KERNEL_OK")
</pallas_src>

<mosaic_0001>
module attributes {stable_mosaic.version = 11 : i64} {
  func.func @gated_transition_kernel(%arg0: i32, %arg1: memref<32x128xbf16, #tpu.memory_space<vmem>>, %arg2: memref<80x32xbf16, #tpu.memory_space<vmem>>, %arg3: memref<16x16xf32, #tpu.memory_space<vmem>>, %arg4: memref<16x4xf32, #tpu.memory_space<vmem>>, %arg5: memref<16x128xbf16, #tpu.memory_space<vmem>>) attributes {dimension_semantics = [#tpu.dimension_semantics<parallel>], iteration_bounds = array<i64: 1>, scalar_prefetch = 0 : i64, scratch_operands = 0 : i64, tpu.core_type = #tpu.core_type<tc>, window_params = [{transform_indices = @transform_0, window_bounds = array<i64: 32, 128>}, {pipeline_mode = #tpu.pipeline_mode<synchronous>, transform_indices = @transform_1, window_bounds = array<i64: 80, 32>}, {pipeline_mode = #tpu.pipeline_mode<synchronous>, transform_indices = @transform_2, window_bounds = array<i64: 16, 16>}, {pipeline_mode = #tpu.pipeline_mode<synchronous>, transform_indices = @transform_3, window_bounds = array<i64: 16, 4>}, {transform_indices = @transform_4, window_bounds = array<i64: 16, 128>}]} {
    %c0 = arith.constant 0 : index
    %c0_0 = arith.constant 0 : index
    %0 = vector.load %arg2[%c0, %c0_0] : memref<80x32xbf16, #tpu.memory_space<vmem>>, vector<80x32xbf16>
    %c0_1 = arith.constant 0 : index
    %c0_2 = arith.constant 0 : index
    %1 = vector.load %arg1[%c0_1, %c0_2] : memref<32x128xbf16, #tpu.memory_space<vmem>>, vector<32x128xbf16>
    %cst = arith.constant dense<0.000000e+00> : vector<80x128xf32>
    %2 = tpu.matmul %0, %1, %cst {dimension_numbers = #tpu.dot_dimension_numbers<[1], [0], [0], [1], [0, 0, 1, 1], [], []>} : vector<80x32xbf16>, vector<32x128xbf16>, vector<80x128xf32> -> vector<80x128xf32>
    %3 = vector.extract_strided_slice %2 {offsets = [0, 0], sizes = [16, 128], strides = [1, 1]} : vector<80x128xf32> to vector<16x128xf32>
    %4 = vector.extract_strided_slice %2 {offsets = [16, 0], sizes = [16, 128], strides = [1, 1]} : vector<80x128xf32> to vector<16x128xf32>
    %5 = math.tanh %4 : vector<16x128xf32>
    %6 = vector.extract_strided_slice %2 {offsets = [32, 0], sizes = [16, 128], strides = [1, 1]} : vector<80x128xf32> to vector<16x128xf32>
    %7 = arith.negf %6 : vector<16x128xf32>
    %8 = math.exp %7 : vector<16x128xf32>
    %cst_3 = arith.constant 1.000000e+00 : f32
    %9 = vector.broadcast %cst_3 : f32 to vector<16x128xf32>
    %10 = arith.addf %9, %8 : vector<16x128xf32>
    %11 = arith.divf %9, %10 : vector<16x128xf32>
    %12 = vector.extract_strided_slice %2 {offsets = [48, 0], sizes = [16, 128], strides = [1, 1]} : vector<80x128xf32> to vector<16x128xf32>
    %13 = arith.negf %12 : vector<16x128xf32>
    %14 = math.exp %13 : vector<16x128xf32>
    %cst_4 = arith.constant 1.000000e+00 : f32
    %15 = vector.broadcast %cst_4 : f32 to vector<16x128xf32>
    %16 = arith.addf %15, %14 : vector<16x128xf32>
    %17 = arith.divf %15, %16 : vector<16x128xf32>
    %18 = vector.extract_strided_slice %2 {offsets = [64, 0], sizes = [16, 128], strides = [1, 1]} : vector<80x128xf32> to vector<16x128xf32>
    %19 = arith.negf %18 : vector<16x128xf32>
    %20 = math.exp %19 : vector<16x128xf32>
    %cst_5 = arith.constant 1.000000e+00 : f32
    %21 = vector.broadcast %cst_5 : f32 to vector<16x128xf32>
    %22 = arith.addf %21, %20 : vector<16x128xf32>
    %23 = arith.divf %21, %22 : vector<16x128xf32>
    %c0_6 = arith.constant 0 : index
    %c0_7 = arith.constant 0 : index
    %24 = vector.load %arg4[%c0_6, %c0_7] : memref<16x4xf32, #tpu.memory_space<vmem>>, vector<16x4xf32>
    %25 = vector.extract_strided_slice %24 {offsets = [0, 0], sizes = [16, 1], strides = [1, 1]} : vector<16x4xf32> to vector<16x1xf32>
    %26 = vector.extract_strided_slice %24 {offsets = [0, 1], sizes = [16, 1], strides = [1, 1]} : vector<16x4xf32> to vector<16x1xf32>
    %27 = vector.extract_strided_slice %24 {offsets = [0, 2], sizes = [16, 1], strides = [1, 1]} : vector<16x4xf32> to vector<16x1xf32>
    %28 = vector.extract_strided_slice %24 {offsets = [0, 3], sizes = [16, 1], strides = [1, 1]} : vector<16x4xf32> to vector<16x1xf32>
    %29 = math.absf %3 : vector<16x128xf32>
    %cst_8 = arith.constant 1.000000e-03 : f32
    %30 = vector.broadcast %cst_8 : f32 to vector<16x128xf32>
    %31 = arith.addf %29, %30 : vector<16x128xf32>
    %32 = math.log %31 : vector<16x128xf32>
    %33 = vector.broadcast %25 : vector<16x1xf32> to vector<16x128xf32>
    %34 = arith.mulf %33, %5 : vector<16x128xf32>
    %35 = arith.mulf %11, %32 : vector<16x128xf32>
    %cst_9 = arith.constant 1.000000e+00 : f32
    %36 = vector.broadcast %cst_9 : f32 to vector<16x128xf32>
    %37 = arith.subf %36, %35 : vector<16x128xf32>
    %38 = vector.broadcast %26 : vector<16x1xf32> to vector<16x128xf32>
    %39 = arith.mulf %38, %37 : vector<16x128xf32>
    %40 = arith.addf %34, %39 : vector<16x128xf32>
    %41 = arith.mulf %17, %23 : vector<16x128xf32>
    %42 = vector.broadcast %27 : vector<16x1xf32> to vector<16x128xf32>
    %43 = arith.mulf %42, %41 : vector<16x128xf32>
    %44 = arith.addf %40, %43 : vector<16x128xf32>
    %45 = arith.mulf %3, %44 : vector<16x128xf32>
    %c0_10 = arith.constant 0 : index
    %c0_11 = arith.constant 0 : index
    %46 = vector.load %arg3[%c0_10, %c0_11] : memref<16x16xf32, #tpu.memory_space<vmem>>, vector<16x16xf32>
    %47 = arith.addf %3, %45 : vector<16x128xf32>
    %cst_12 = arith.constant dense<0.000000e+00> : vector<16x128xf32>
    %48 = tpu.matmul %46, %47, %cst_12 {dimension_numbers = #tpu.dot_dimension_numbers<[1], [0], [0], [1], [0, 0, 1, 1], [], []>} : vector<16x16xf32>, vector<16x128xf32>, vector<16x128xf32> -> vector<16x128xf32>
    %49 = vector.broadcast %28 : vector<16x1xf32> to vector<16x128xf32>
    %50 = arith.addf %48, %49 : vector<16x128xf32>
    %51 = arith.truncf %50 : vector<16x128xf32> to vector<16x128xbf16>
    %c0_13 = arith.constant 0 : index
    %c0_14 = arith.constant 0 : index
    %52 = vector.load %arg5[%c0_13, %c0_14] : memref<16x128xbf16, #tpu.memory_space<vmem>>, vector<16x128xbf16>
    tpu.vector_store %arg5[%c0_13, %c0_14], %51 {strides = array<i32>} : memref<16x128xbf16, #tpu.memory_space<vmem>>, vector<16x128xbf16>,
    return
  }
  func.func @transform_0(%arg0: i32) -> (i32, i32) {
    %c0_i32 = arith.constant 0 : i32
    %c0_i32_0 = arith.constant 0 : i32
    return %c0_i32, %arg0 : i32, i32
  }
  func.func @transform_1(%arg0: i32) -> (i32, i32) {
    %c0_i32 = arith.constant 0 : i32
    %c0_i32_0 = arith.constant 0 : i32
    %c0_i32_1 = arith.constant 0 : i32
    return %c0_i32, %c0_i32_0 : i32, i32
  }
  func.func @transform_2(%arg0: i32) -> (i32, i32) {
    %c0_i32 = arith.constant 0 : i32
    %c0_i32_0 = arith.constant 0 : i32
    %c0_i32_1 = arith.constant 0 : i32
    return %c0_i32, %c0_i32_0 : i32, i32
  }
  func.func @transform_3(%arg0: i32) -> (i32, i32) {
    %c0_i32 = arith.constant 0 : i32
    %c0_i32_0 = arith.constant 0 : i32
    %c0_i32_1 = arith.constant 0 : i32
    return %c0_i32, %c0_i32_0 : i32, i32
  }
  func.func @transform_4(%arg0: i32) -> (i32, i32) {
    %c0_i32 = arith.constant 0 : i32
    %c0_i32_0 = arith.constant 0 : i32
    return %c0_i32, %arg0 : i32, i32
  }
}

</mosaic_0001>

<llo_original>
// kernel: neg.3
$region0: #{neg.3}
  #allocation0 [shape = 's32[1]{0}', space=sflag, size = 0x4, scoped, tag = 'scoped memory for neg.3']
  %s0 = inlined_call_operand.vmem [shape: f32[1,16], index: 0, kind: input, shape index: {}]
  %s1 = inlined_call_operand.vmem [shape: bf16[1,16], index: 1, kind: output, shape index: {}]
  %v2 = vld [vmem:[%s0] sm:$0x1]
  %3 = xla_tuple %v2
  %4 = xla_tuple %3
  %v5 = vxor.u32 %v2, 2147483648
  %6 = xla_tuple %v5
  %v7 = vpack.c.bf16 0.0, %v5
  %8 = vst [vmem:[%s1] sm:$0x1] %v7

// kernel: _gated_transition_impl.1
$region0: #{_gated_transition_impl.1}
  #allocation0 [shape = 'u32[]', space=smem, size = 0x4, offset = 0x4, fixed_abs, tag = 'smem constant byte address 0x4 - core index']
  #allocation1 [shape = 'u32[144,128]{1,0:T(1,128)}', space=vmem, size = 0x12000, scoped, tag = 'internal scratch']
  %s0 = inlined_call_operand.vmem [shape: bf16[32,128], index: 0, kind: input, shape index: {}]
  %s1 = inlined_call_operand.vmem [shape: bf16[80,32], index: 1, kind: input, shape index: {}]
  %s2 = inlined_call_operand.vmem [shape: f32[16,16], index: 2, kind: input, shape index: {}]
  %s3 = inlined_call_operand.vmem [shape: f32[16,4], index: 3, kind: input, shape index: {}]
  %s4 = inlined_call_operand.vmem [shape: bf16[16,128], index: 4, kind: output, shape index: {}]
  %s5 = sld [smem:[#allocation0]]
  $region26: #{_gated_transition_impl.1} parent=0
    _
  %s7 = ssub.s32 1, %s5
  %s8 = scalar_select 0, %s7, %s5
  // Predicated region
  $region2: #{_gated_transition_impl.1} parent=0 // pred_check
    _
  $region3: #{_gated_transition_impl.1} parent=0 // pred_check_branch
    %10 = sbr.rel (0) target = $region5
  $region4: #{_gated_transition_impl.1} parent=0 // pred_region
    _
  $region5: #{_gated_transition_impl.1} parent=0 // pred_fallthru
    _
  // Predicated region
  $region6: #{_gated_transition_impl.1} parent=0 // pred_check
    _
  $region7: #{_gated_transition_impl.1} parent=0 // pred_check_branch
    %12 = sbr.rel (0) target = $region9
  $region8: #{_gated_transition_impl.1} parent=0 // pred_region
    _
  $region9: #{_gated_transition_impl.1} parent=0 // pred_fallthru
    _
  // Predicated region
  $region10: #{_gated_transition_impl.1} parent=0 // pred_check
    _
  $region11: #{_gated_transition_impl.1} parent=0 // pred_check_branch
    %14 = sbr.rel (0) target = $region13
  $region12: #{_gated_transition_impl.1} parent=0 // pred_region
    _
  $region13: #{_gated_transition_impl.1} parent=0 // pred_fallthru
    _
  // Predicated region
  $region14: #{_gated_transition_impl.1} parent=0 // pred_check
    _
  $region15: #{_gated_transition_impl.1} parent=0 // pred_check_branch
    %16 = sbr.rel (0) target = $region17
  $region16: #{_gated_transition_impl.1} parent=0 // pred_region
    _
  $region17: #{_gated_transition_impl.1} parent=0 // pred_fallthru
    _
  %v18 = vld [vmem:[%s1] sm:$0xf]
  %v19 = vld [vmem:[%s1 + $0x4] sm:$0xf]
  %v20 = vld [vmem:[%s1 + $0x8] sm:$0xf]
  %v21 = vld [vmem:[%s1 + $0xc] sm:$0xf]
  %v22 = vld [vmem:[%s1 + $0x10] sm:$0xf]
  %v23 = vld [vmem:[%s1 + $0x14] sm:$0xf]
  %v24 = vld [vmem:[%s1 + $0x18] sm:$0xf]
  %v25 = vld [vmem:[%s1 + $0x1c] sm:$0xf]
  %v26 = vld [vmem:[%s1 + $0x20] sm:$0xf]
  %v27 = vld [vmem:[%s1 + $0x24] sm:$0xf]
  %v28 = vld [vmem:[%s0] sm:$0xf]
  %v29 = vld [vmem:[%s0 + $0x4] sm:$0xf]
  %v30 = vld [vmem:[%s0 + $0x8] sm:$0xf]
  %v31 = vld [vmem:[%s0 + $0xc] sm:$0xf]
  %v42 = vunpack.c.l.b16 %v18
  %v43 = vunpack.c.l.b16 %v19
  %v44 = vunpack.c.l.b16 %v20
  %v45 = vunpack.c.l.b16 %v21
  %v46 = vunpack.c.l.b16 %v22
  %v47 = vunpack.c.l.b16 %v23
  %v48 = vunpack.c.l.b16 %v24
  %v49 = vunpack.c.l.b16 %v25
  %v50 = vunpack.c.l.b16 %v26
  %v51 = vunpack.c.l.b16 %v27
  %v52 = vpack.c.b16 %v43, %v42
  %v53 = vpack.c.b16 %v45, %v44
  %v54 = vpack.c.b16 %v47, %v46
  %v55 = vpack.c.b16 %v49, %v48
  %v56 = vpack.c.b16 %v51, %v50
  %v61 = vunpack.c.l.b16 %v28
  %v62 = vunpack.c.l.b16 %v29
  %v63 = vunpack.c.l.b16 %v30
  %v64 = vunpack.c.l.b16 %v31
  %v65 = vpack.c.b16 %v62, %v61
  %v66 = vpack.c.b16 %v64, %v63
  %vm69 = vcmask 261120
  %v71 = vsel %vm69, %v52, 0
  %v74 = vsel %vm69, %v53, 0
  %v77 = vsel %vm69, %v54, 0
  %v80 = vsel %vm69, %v55, 0
  %v83 = vsel %vm69, %v56, 0
  %85 = vmatprep.subr.bf16.mxu0 0
  %86 = vmatpush1.bf16.msra.mxu0 %v65
  %87 = vmatprep.subr.bf16.mxu0 0
  %88 = vmatpush1.bf16.msra.mxu0 %v66
  %89 = vmatprep.subr.bf16.mxu0 0
  %90 = vmatpush1.bf16.msra.mxu0 0
  %91 = vmatprep.subr.bf16.mxu0 0
  %92 = vmatpush1.bf16.msra.mxu0 0
  %93 = vmatprep.subr.bf16.mxu0 0
  %94 = vmatpush1.bf16.msra.mxu0 0
  %95 = vmatprep.subr.bf16.mxu0 0
  %96 = vmatpush1.bf16.msra.mxu0 0
  %97 = vmatprep.subr.bf16.mxu0 0
  %98 = vmatpush1.bf16.msra.mxu0 0
  %99 = vmatprep.subr.bf16.mxu0 0
  %100 = vmatpush1.bf16.msra.mxu0 0
  %101 = vmatprep.subr.bf16.mxu0 0
  %102 = vmatpush1.bf16.msra.mxu0 0
  %103 = vmatprep.subr.bf16.mxu0 0
  %104 = vmatpush1.bf16.msra.mxu0 0
  %105 = vmatprep.subr.bf16.mxu0 0
  %106 = vmatpush1.bf16.msra.mxu0 0
  %107 = vmatprep.subr.bf16.mxu0 0
  %108 = vmatpush1.bf16.msra.mxu0 0
  %109 = vmatprep.subr.bf16.mxu0 0
  %110 = vmatpush1.bf16.msra.mxu0 0
  %111 = vmatprep.subr.bf16.mxu0 0
  %112 = vmatpush1.bf16.msra.mxu0 0
  %113 = vmatprep.subr.bf16.mxu0 0
  %114 = vmatpush1.bf16.msra.mxu0 0
  %115 = vmatprep.subr.bf16.mxu0 0
  %116 = vmatpush1.bf16.msra.mxu0 0
  %117 = vmatprep.mubr.bf16.mxu0 0
  %118 = vmatmul.mubr.bf16.gmra.mrb[0].mxu0 %v71
  %v119 = vpop.f32.mrb[0].mxu0
  %v120 = vadd.f32 0.0, %v119
  %v121 = vpop.f32.mrb[0].mxu0
  %v122 = vpop.f32.mrb[0].mxu0
  %v123 = vadd.f32 0.0, %v122
  %v124 = vpop.f32.mrb[0].mxu0
  %125 = vmatprep.mubr.bf16.mxu0 0
  %126 = vmatmul.mubr.bf16.gmra.mrb[0].mxu0 %v74
  %v127 = vpop.f32.mrb[0].mxu0
  %v128 = vadd.f32 0.0, %v127
  %v129 = vpop.f32.mrb[0].mxu0
  %v130 = vpop.f32.mrb[0].mxu0
  %v131 = vadd.f32 0.0, %v130
  %v132 = vpop.f32.mrb[0].mxu0
  %133 = vmatprep.mubr.bf16.mxu0 0
  %134 = vmatmul.mubr.bf16.gmra.mrb[0].mxu0 %v77
  %v135 = vpop.f32.mrb[0].mxu0
  %v136 = vadd.f32 0.0, %v135
  %v137 = vpop.f32.mrb[0].mxu0
  %v138 = vpop.f32.mrb[0].mxu0
  %v139 = vadd.f32 0.0, %v138
  %v140 = vpop.f32.mrb[0].mxu0
  %141 = vmatprep.mubr.bf16.mxu0 0
  %142 = vmatmul.mubr.bf16.gmra.mrb[0].mxu0 %v80
  %v143 = vpop.f32.mrb[0].mxu0
  %v144 = vadd.f32 0.0, %v143
  %v145 = vpop.f32.mrb[0].mxu0
  %v146 = vpop.f32.mrb[0].mxu0
  %v147 = vadd.f32 0.0, %v146
  %v148 = vpop.f32.mrb[0].mxu0
  %149 = vmatprep.mubr.bf16.mxu0 0
  %150 = vmatmul.mubr.bf16.gmra.mrb[0].mxu0 %v83
  %v151 = vpop.f32.mrb[0].mxu0
  %v152 = vadd.f32 0.0, %v151
  %v153 = vpop.f32.mrb[0].mxu0
  %v154 = vpop.f32.mrb[0].mxu0
  %v155 = vadd.f32 0.0, %v154
  %v156 = vpop.f32.mrb[0].mxu0
  %157 = vdwg.mxu0
  %v158 = vtanh.pop %v128
  %v159 = vtanh.pop %v131
  %v160 = vxor.u32 %v136, 2147483648
  %v161 = vxor.u32 %v139, 2147483648
  %v162 = vmul.f32 %v160, 1.442695
  %v163 = vpow.pop %v162
  %v164 = vmul.f32 %v161, 1.442695
  %v165 = vpow.pop %v164
  %v166 = vadd.f32 %v163, 1.0
  %v167 = vadd.f32 %v165, 1.0
  %v168 = vrcp.pop %v166
  %v169 = vmul.f32 1.0, %v168
  %v170 = vrcp.pop %v167
  %v171 = vmul.f32 1.0, %v170
  %v172 = vxor.u32 %v144, 2147483648
  %v173 = vxor.u32 %v147, 2147483648
  %v174 = vmul.f32 %v172, 1.442695
  %v175 = vpow.pop %v174
  %v176 = vmul.f32 %v173, 1.442695
  %v177 = vpow.pop %v176
  %v178 = vadd.f32 %v175, 1.0
  %v179 = vadd.f32 %v177, 1.0
  %v180 = vrcp.pop %v178
  %v181 = vmul.f32 1.0, %v180
  %v182 = vrcp.pop %v179
  %v183 = vmul.f32 1.0, %v182
  %v184 = vxor.u32 %v152, 2147483648
  %v185 = vxor.u32 %v155, 2147483648
  %v186 = vmul.f32 %v184, 1.442695
  %v187 = vpow.pop %v186
  %v188 = vmul.f32 %v185, 1.442695
  %v189 = vpow.pop %v188
  %v190 = vadd.f32 %v187, 1.0
  %v191 = vadd.f32 %v189, 1.0
  %v192 = vrcp.pop %v190
  %v193 = vmul.f32 1.0, %v192
  %v194 = vrcp.pop %v191
  %v195 = vmul.f32 1.0, %v194
  %v196 = vld [vmem:[%s3] sm:$0xff]
  %v197 = vld [vmem:[%s3 + $0x8] sm:$0xff]
  %v198 = vand.u32 2147483647, %v120
  %v199 = vand.u32 2147483647, %v123
  %v200 = vadd.f32 %v198, 0.001
  %v201 = vadd.f32 %v199, 0.001
  %v202 = vlog2.pop %v200
  %v203 = vmul.f32 %v202, 0.6931472
  %v204 = vlog2.pop %v201
  %v205 = vmul.f32 %v204, 0.6931472
  %207 = vset.pattern.permute.xlu0 0
  %208 = vperm.xlu0 %207, %v196
  %v209 = vpop.permute.xlu0 %208
  %212 = vset.pattern.permute.xlu0 0
  %213 = vperm.xlu0 %212, %v197
  %v214 = vpop.permute.xlu0 %213
  %v216 = vmul.f32 %v209, %v158
  %v217 = vmul.f32 %v214, %v159
  %v218 = vmul.f32 %v169, %v203
  %v219 = vmul.f32 %v171, %v205
  %v220 = vsub.f32 1.0, %v218
  %v221 = vsub.f32 1.0, %v219
  %222 = vset.pattern.permute.xlu0 1
  %223 = vperm.xlu0 %222, %v196
  %v224 = vpop.permute.xlu0 %223
  %226 = vset.pattern.permute.xlu0 1
  %227 = vperm.xlu0 %226, %v197
  %v228 = vpop.permute.xlu0 %227
  %v230 = vmul.f32 %v224, %v220
  %v231 = vmul.f32 %v228, %v221
  %v232 = vadd.f32 %v216, %v230
  %v233 = vadd.f32 %v217, %v231
  %v234 = vmul.f32 %v181, %v193
  %v235 = vmul.f32 %v183, %v195
  %236 = vset.pattern.permute.xlu0 2
  %237 = vperm.xlu0 %236, %v196
  %v238 = vpop.permute.xlu0 %237
  %240 = vset.pattern.permute.xlu0 2
  %241 = vperm.xlu0 %240, %v197
  %v242 = vpop.permute.xlu0 %241
  %v244 = vmul.f32 %v238, %v234
  %v245 = vmul.f32 %v242, %v235
  %v246 = vadd.f32 %v232, %v244
  %v247 = vadd.f32 %v233, %v245
  %v248 = vmul.f32 %v120, %v246
  %v249 = vmul.f32 %v123, %v247
  %v250 = vld [vmem:[%s2] sm:$0xff]
  %v251 = vld [vmem:[%s2 + $0x8] sm:$0xff]
  %v252 = vadd.f32 %v120, %v248
  %v253 = vadd.f32 %v123, %v249
  %254 = vset.pattern.permute.xlu0 3
  %255 = vperm.xlu0 %254, %v196
  %v256 = vpop.permute.xlu0 %255
  %258 = vset.pattern.permute.xlu0 3
  %259 = vperm.xlu0 %258, %v197
  %v260 = vpop.permute.xlu0 %259
  %vm262 = vcmask 130048
  %v264 = vsel %vm262, %v250, 0
  %v267 = vsel %vm262, %v251, 0
  %269 = vmatprep.subr.mxu0 0.0
  %270 = vmatpush1.msra.mxu0 %v252
  %271 = vmatprep.subr.mxu0 0.0
  %272 = vmatpush1.msra.mxu0 %v253
  %273 = vmatprep.subr.mxu0 0.0
  %274 = vmatpush1.msra.mxu0 0.0
  %275 = vmatprep.subr.mxu0 0.0
  %276 = vmatpush1.msra.mxu0 0.0
  %277 = vmatprep.subr.mxu0 0.0
  %278 = vmatpush1.msra.mxu0 0.0
  %279 = vmatprep.subr.mxu0 0.0
  %280 = vmatpush1.msra.mxu0 0.0
  %281 = vmatprep.subr.mxu0 0.0
  %282 = vmatpush1.msra.mxu0 0.0
  %283 = vmatprep.subr.mxu0 0.0
  %284 = vmatpush1.msra.mxu0 0.0
  %285 = vmatprep.subr.mxu0 0.0
  %286 = vmatpush1.msra.mxu0 0.0
  %287 = vmatprep.subr.mxu0 0.0
  %288 = vmatpush1.msra.mxu0 0.0
  %289 = vmatprep.subr.mxu0 0.0
  %290 = vmatpush1.msra.mxu0 0.0
  %291 = vmatprep.subr.mxu0 0.0
  %292 = vmatpush1.msra.mxu0 0.0
  %293 = vmatprep.subr.mxu0 0.0
  %294 = vmatpush1.msra.mxu0 0.0
  %295 = vmatprep.subr.mxu0 0.0
  %296 = vmatpush1.msra.mxu0 0.0
  %297 = vmatprep.subr.mxu0 0.0
  %298 = vmatpush1.msra.mxu0 0.0
  %299 = vmatprep.subr.mxu0 0.0
  %300 = vmatpush1.msra.mxu0 0.0
  %301 = vmatprep.subr.mxu0 0.0
  %302 = vmatpush1.msra.mxu0 0.0
  %303 = vmatprep.subr.mxu0 0.0
  %304 = vmatpush1.msra.mxu0 0.0
  %305 = vmatprep.subr.mxu0 0.0
  %306 = vmatpush1.msra.mxu0 0.0
  %307 = vmatprep.subr.mxu0 0.0
  %308 = vmatpush1.msra.mxu0 0.0
  %309 = vmatprep.subr.mxu0 0.0
  %310 = vmatpush1.msra.mxu0 0.0
  %311 = vmatprep.subr.mxu0 0.0
  %312 = vmatpush1.msra.mxu0 0.0
  %313 = vmatprep.subr.mxu0 0.0
  %314 = vmatpush1.msra.mxu0 0.0
  %315 = vmatprep.subr.mxu0 0.0
  %316 = vmatpush1.msra.mxu0 0.0
  %317 = vmatprep.subr.mxu0 0.0
  %318 = vmatpush1.msra.mxu0 0.0
  %319 = vmatprep.subr.mxu0 0.0
  %320 = vmatpush1.msra.mxu0 0.0
  %321 = vmatprep.subr.mxu0 0.0
  %322 = vmatpush1.msra.mxu0 0.0
  %323 = vmatprep.subr.mxu0 0.0
  %324 = vmatpush1.msra.mxu0 0.0
  %325 = vmatprep.subr.mxu0 0.0
  %326 = vmatpush1.msra.mxu0 0.0
  %327 = vmatprep.subr.mxu0 0.0
  %328 = vmatpush1.msra.mxu0 0.0
  %329 = vmatprep.subr.mxu0 0.0
  %330 = vmatpush1.msra.mxu0 0.0
  %331 = vmatprep.subr.mxu0 0.0
  %332 = vmatpush1.msra.mxu0 0.0
  %333 = vmatprep.mubr.f32.mxu0 0.0
  %334 = vmatmul.mubr.f32.gmra.mrb[0].mxu0 %v264
  %v335 = vpop.f32.mrb[0].mxu0
  %v336 = vadd.f32 %v256, %v335
  %v337 = vpop.f32.mrb[0].mxu0
  %338 = vmatprep.mubr.f32.mxu0 0.0
  %339 = vmatmul.mubr.f32.gmra.mrb[0].mxu0 %v267
  %v340 = vpop.f32.mrb[0].mxu0
  %v341 = vadd.f32 %v260, %v340
  %v342 = vpop.f32.mrb[0].mxu0
  %343 = vdwg.mxu0
  %v344 = vpack.c.bf16 %v341, %v336
  %v346 = vunpack.c.l.b16 %v344
  %v347 = vunpack.c.h.b16 %v344
  %v348 = vpack.c.b16 %v346, %v346
  %v349 = vpack.c.b16 %v347, %v347
  %352 = vst [vmem:[%s4] sm:$0xf] %v348
  %353 = vst [vmem:[%s4 + $0x4] sm:$0xf] %v349
  // Predicated region
  $region18: #{_gated_transition_impl.1} parent=0 // pred_check
    _
  $region19: #{_gated_transition_impl.1} parent=0 // pred_check_branch
    %355 = sbr.rel (0) target = $region21
  $region20: #{_gated_transition_impl.1} parent=0 // pred_region
    _
  $region21: #{_gated_transition_impl.1} parent=0 // pred_fallthru
    _
  // Predicated region
  $region22: #{_gated_transition_impl.1} parent=0 // pred_check
    _
  $region23: #{_gated_transition_impl.1} parent=0 // pred_check_branch
    %357 = sbr.rel (0) target = $region25
  $region24: #{_gated_transition_impl.1} parent=0 // pred_region
    _
  $region25: #{_gated_transition_impl.1} parent=0 // pred_fallthru
    _

</llo_original>
